<compile_context>
chip_gen: v5e
topology: v5e:2x2
jax: 0.10.0
libtpu: 0.0.40
codegen_flags: <defaults>
</compile_context>

<pallas_src>
import math

import jax
import jax.numpy as jnp
from jax.experimental import pallas as pl
from jax.experimental.pallas import tpu as pltpu


def build_pe_table(d_model: int, max_len: int = 500) -> jnp.ndarray:
    """Deterministic sinusoidal table, identical to the PyTorch __init__."""
    pos = jnp.arange(max_len, dtype=jnp.float32)[:, None]                   # (max_len, 1)
    div = jnp.exp(jnp.arange(0, d_model, 2, dtype=jnp.float32)
                  * (-math.log(10000.0) / d_model))                         # (ceil(D/2),)
    angles = pos * div                                                      # (max_len, ceil(D/2))
    pe = jnp.zeros((max_len, d_model), dtype=jnp.float32)
    pe = pe.at[:, 0::2].set(jnp.sin(angles))
    pe = pe.at[:, 1::2].set(jnp.cos(angles)[:, : d_model // 2])
    return pe                                                               # (max_len, d_model)


def _add_pe_kernel(x_ref, pe_ref, o_ref):
    # x_ref: (TB, TC) tile of flattened activations; pe_ref: (1, TC) shared
    # table tile -> broadcasts across the row (batch) dimension.
    o_ref[...] = x_ref[...] + pe_ref[...]


def _choose_row_tile(n_rows: int, cap: int = 64) -> int:
    """Largest multiple of 8 dividing n_rows (<= cap); else full extent (allowed)."""
    if n_rows % 8 != 0:
        return n_rows
    for cand in range(max(8, (min(n_rows, cap) // 8) * 8), 7, -8):
        if n_rows % cand == 0:
            return cand
    return n_rows


def _choose_col_tile(n_cols: int, row_tile: int, itemsize: int,
                     budget_bytes: int) -> int:
    """Largest multiple of 128 dividing n_cols with row_tile*tc*itemsize <= budget;
    else the full extent (allowed because it equals the array dim)."""
    if n_cols % 128 != 0:
        return n_cols
    max_cols = max(128, (budget_bytes // max(row_tile * itemsize, 1)) // 128 * 128)
    for cand in range(min(n_cols, max_cols), 127, -128):
        if n_cols % cand == 0:
            return cand
    return n_cols


def positional_encoding_forward(x: jnp.ndarray, pe_table: jnp.ndarray, *,
                                row_tile_cap: int = 64,
                                col_budget_bytes: int = 1 << 20) -> jnp.ndarray:
    """x: (B, S, D).  Returns x + pe[:S] broadcast over batch (same dtype as x)."""
    B, S, D = x.shape
    if S > pe_table.shape[0]:
        raise ValueError(f"sequence length {S} exceeds max_len={pe_table.shape[0]}")
    if D != pe_table.shape[1]:
        raise ValueError(f"d_model mismatch: x has {D}, pe has {pe_table.shape[1]}")

    C = S * D
    itemsize = jnp.dtype(x.dtype).itemsize

    # Lane-dense 2D flattening: (B, S, D) -> (B, S*D); pe -> (1, S*D) in x.dtype.
    x2 = x.reshape(B, C)
    pe2 = pe_table[:S, :].astype(x.dtype).reshape(1, C)

    tb = _choose_row_tile(B, cap=row_tile_cap)
    tc = _choose_col_tile(C, tb, itemsize, col_budget_bytes)
    n_row = B // tb
    n_col = C // tc

    out2 = pl.pallas_call(
        _add_pe_kernel,
        out_shape=jax.ShapeDtypeStruct((B, C), x.dtype),
        grid_spec=pltpu.PrefetchScalarGridSpec(
            num_scalar_prefetch=0,
            # Column tiles on the OUTER axis, rows INNER: the pe block index is
            # constant along the inner axis, so Pallas keeps it resident instead
            # of re-fetching it from HBM every grid step.
            grid=(n_col, n_row),
            in_specs=[
                pl.BlockSpec((tb, tc), lambda c, r: (r, c)),   # x tile
                pl.BlockSpec((1, tc), lambda c, r: (0, c)),    # shared pe tile
            ],
            out_specs=pl.BlockSpec((tb, tc), lambda c, r: (r, c)),
        ),
        compiler_params=pltpu.CompilerParams(
            dimension_semantics=("parallel", "parallel"),
        ),
    )(x2, pe2)

    return out2.reshape(B, S, D)


if __name__ == "__main__":
    key = jax.random.PRNGKey(0)

    # --- Small smoke test at module-consistent shapes (B=2, S=8, D=32, f32) ---
    B, S, D = 2, 8, 32
    pe_small = build_pe_table(d_model=D, max_len=500)
    x = jax.random.normal(key, (B, S, D), dtype=jnp.float32)

    out = jax.block_until_ready(positional_encoding_forward(x, pe_small))
    ref = x + pe_small[None, :S, :].astype(x.dtype)
    assert out.shape == (B, S, D)
    assert jnp.allclose(out, ref, atol=1e-6), "f32 mismatch vs reference"

    # --- Larger bf16 case exercising the multi-tile grid on BOTH axes and the
    #     pe -> x.dtype cast path (row tile 16 keeps bf16 sublane packing happy).
    B2, S2, D2 = 32, 128, 128
    pe_big = build_pe_table(d_model=D2, max_len=500)
    x2 = jax.random.normal(jax.random.PRNGKey(0), (B2, S2, D2), dtype=jnp.bfloat16)

    out2 = jax.block_until_ready(
        positional_encoding_forward(
            x2, pe_big, row_tile_cap=16, col_budget_bytes=128 * 1024))
    ref2 = x2 + pe_big[None, :S2, :].astype(x2.dtype)
    assert out2.shape == (B2, S2, D2)
    assert jnp.allclose(out2.astype(jnp.float32), ref2.astype(jnp.float32),
                        atol=1e-2), "bf16 mismatch vs reference"

    print("KERNEL_OK")
</pallas_src>

<mosaic_0001>
module attributes {stable_mosaic.version = 11 : i64} {
  func.func @_add_pe_kernel(%arg0: i32, %arg1: i32, %arg2: memref<2x256xf32, #tpu.memory_space<vmem>>, %arg3: memref<1x256xf32, #tpu.memory_space<vmem>>, %arg4: memref<2x256xf32, #tpu.memory_space<vmem>>) attributes {dimension_semantics = [#tpu.dimension_semantics<parallel>, #tpu.dimension_semantics<parallel>], iteration_bounds = array<i64: 1, 1>, scalar_prefetch = 0 : i64, scratch_operands = 0 : i64, tpu.core_type = #tpu.core_type<tc>, window_params = [{transform_indices = @transform_0, window_bounds = array<i64: 2, 256>}, {transform_indices = @transform_1, window_bounds = array<i64: 1, 256>}, {transform_indices = @transform_2, window_bounds = array<i64: 2, 256>}]} {
    %c0 = arith.constant 0 : index
    %c0_0 = arith.constant 0 : index
    %0 = vector.load %arg2[%c0, %c0_0] : memref<2x256xf32, #tpu.memory_space<vmem>>, vector<2x256xf32>
    %c0_1 = arith.constant 0 : index
    %c0_2 = arith.constant 0 : index
    %1 = vector.load %arg3[%c0_1, %c0_2] : memref<1x256xf32, #tpu.memory_space<vmem>>, vector<1x256xf32>
    %2 = vector.broadcast %1 : vector<1x256xf32> to vector<2x256xf32>
    %3 = arith.addf %0, %2 : vector<2x256xf32>
    %c0_3 = arith.constant 0 : index
    %c0_4 = arith.constant 0 : index
    %4 = vector.load %arg4[%c0_3, %c0_4] : memref<2x256xf32, #tpu.memory_space<vmem>>, vector<2x256xf32>
    tpu.vector_store %arg4[%c0_3, %c0_4], %3 {strides = array<i32>} : memref<2x256xf32, #tpu.memory_space<vmem>>, vector<2x256xf32>,
    return
  }
  func.func @transform_0(%arg0: i32, %arg1: i32) -> (i32, i32) {
    %c0_i32 = arith.constant 0 : i32
    return %arg1, %arg0 : i32, i32
  }
  func.func @transform_1(%arg0: i32, %arg1: i32) -> (i32, i32) {
    %c0_i32 = arith.constant 0 : i32
    %c0_i32_0 = arith.constant 0 : i32
    return %c0_i32, %arg0 : i32, i32
  }
  func.func @transform_2(%arg0: i32, %arg1: i32) -> (i32, i32) {
    %c0_i32 = arith.constant 0 : i32
    return %arg1, %arg0 : i32, i32
  }
}

</mosaic_0001>

<llo_original>
// kernel: tpu_custom_call.1
$region0: #{tpu_custom_call.1}
  #allocation0 [shape = 'u32[]', space=smem, size = 0x4, offset = 0x4, fixed_abs, tag = 'smem constant byte address 0x4 - core index']
  #allocation1 [shape = 'u32[72,128]{1,0:T(1,128)}', space=vmem, size = 0x9000, scoped, tag = 'internal scratch']
  %s0 = inlined_call_operand.hbm [shape: f32[2,256], index: 0, kind: input, shape index: {}]
  %s1 = inlined_call_operand.hbm [shape: f32[1,256], index: 1, kind: input, shape index: {}]
  %s2 = inlined_call_operand.hbm [shape: f32[2,256], index: 2, kind: output, shape index: {}]
  %s3 = sld [smem:[#allocation0]]
  $region26: #{tpu_custom_call.1} parent=0
    _
  %s5 = ssub.s32 1, %s3
  %s6 = scalar_select 0, %s5, %s3
  $region1: #{tpu_custom_call.1} parent=0
    #allocation2 [shape = 'u8[2048]{0}', space=vmem, size = 0x800, scoped, tag = 'input window, operand 0, single buffered']
    #allocation3 [shape = 's32[1]{0}', space=sflag, size = 0x4, scoped, tag = 'scoped memory for tpu_custom_call.1']
    #allocation4 [shape = 's32[1]{0}', space=sflag, size = 0x4, scoped, tag = 'scoped memory for tpu_custom_call.1']
    #allocation5 [shape = 'u8[1024]{0}', space=vmem, size = 0x400, scoped, tag = 'input window, operand 1, single buffered']
    #allocation6 [shape = 's32[1]{0}', space=sflag, size = 0x4, scoped, tag = 'scoped memory for tpu_custom_call.1']
    #allocation7 [shape = 'u8[2048]{0}', space=vmem, size = 0x800, scoped, tag = 'output window, operand 0, single buffered']
    %7 = vsyncpa [#allocation3], 0
    %8 = vsyncpa [#allocation6], 0
    %9 = vsyncpa [#allocation4], 0
    // Predicated region
    $region2: #{tpu_custom_call.1} parent=1 // pred_check
      _
    $region3: #{tpu_custom_call.1} parent=1 // pred_check_branch
      %11 = sbr.rel (0) target = $region5
    $region4: #{tpu_custom_call.1} parent=1 // pred_region
      %13 = vsyncadd [#allocation3], 0
      %s15 = sshll.u32 %s0, 4
      %s16 = int_to_ptr.hbm [resolvable:$true] %s15
      %s17 = sshll.u32 [#allocation2], 4
      %s18 = int_to_ptr.vmem [resolvable:$true] %s17
      %20 = dma.hbm_to_vmem [thread:$0]  %s16, 64, %s18, [#allocation3]
    $region5: #{tpu_custom_call.1} parent=1 // pred_fallthru
      _
    // Predicated region
    $region6: #{tpu_custom_call.1} parent=1 // pred_check
      _
    $region7: #{tpu_custom_call.1} parent=1 // pred_check_branch
      %22 = sbr.rel (0) target = $region9
    $region8: #{tpu_custom_call.1} parent=1 // pred_region
      %24 = vsyncadd [#allocation6], 0
      %s26 = sshll.u32 %s1, 4
      %s27 = int_to_ptr.hbm [resolvable:$true] %s26
      %s28 = sshll.u32 [#allocation5], 4
      %s29 = int_to_ptr.vmem [resolvable:$true] %s28
      %31 = dma.hbm_to_vmem [thread:$0]  %s27, 32, %s29, [#allocation6]
    $region9: #{tpu_custom_call.1} parent=1 // pred_fallthru
      _
    // Predicated region
    $region10: #{tpu_custom_call.1} parent=1 // pred_check
      _
    $region11: #{tpu_custom_call.1} parent=1 // pred_check_branch
      %33 = sbr.rel (0) target = $region13
    $region12: #{tpu_custom_call.1} parent=1 // pred_region
      %35 = dma.done [#allocation3], 64
    $region13: #{tpu_custom_call.1} parent=1 // pred_fallthru
      _
    // Predicated region
    $region14: #{tpu_custom_call.1} parent=1 // pred_check
      _
    $region15: #{tpu_custom_call.1} parent=1 // pred_check_branch
      %37 = sbr.rel (0) target = $region17
    $region16: #{tpu_custom_call.1} parent=1 // pred_region
      %39 = dma.done [#allocation6], 32
    $region17: #{tpu_custom_call.1} parent=1 // pred_fallthru
      _
    %v40 = vld [vmem:[#allocation2] sm:$0xf]
    %v41 = vld [vmem:[#allocation5] sm:$0x3]
    %v43 = vperm.slane %v41, 0
    %v44 = vperm.slane %v41, 1
    %v45 = vrot.slane %v44, 6
    %vm46 = vcmask 1041408
    %v47 = vsel %vm46, %v43, %v45
    %v49 = vadd.f32 %v40, %v47
    %50 = vst [vmem:[#allocation7] sm:$0xf] %v49
    // Predicated region
    $region18: #{tpu_custom_call.1} parent=1 // pred_check
      _
    $region19: #{tpu_custom_call.1} parent=1 // pred_check_branch
      %52 = sbr.rel (0) target = $region21
    $region20: #{tpu_custom_call.1} parent=1 // pred_region
      %54 = vsyncadd [#allocation4], 0
      %s56 = sshll.u32 [#allocation7], 4
      %s57 = int_to_ptr.vmem [resolvable:$true] %s56
      %s58 = sshll.u32 %s2, 4
      %s59 = int_to_ptr.hbm [resolvable:$true] %s58
      %61 = dma.vmem_to_hbm [thread:$0]  %s57, 64, %s59, [#allocation4]
    $region21: #{tpu_custom_call.1} parent=1 // pred_fallthru
      _
    // Predicated region
    $region22: #{tpu_custom_call.1} parent=1 // pred_check
      _
    $region23: #{tpu_custom_call.1} parent=1 // pred_check_branch
      %63 = sbr.rel (0) target = $region25
    $region24: #{tpu_custom_call.1} parent=1 // pred_region
      %65 = dma.done [#allocation4], 64
    $region25: #{tpu_custom_call.1} parent=1 // pred_fallthru
      _
    %66 = vsyncpa [#allocation3], 1
    %67 = vsyncpa [#allocation6], 1
    %68 = vsyncpa [#allocation4], 1

</llo_original>
